<compile_context>
chip_gen: v7x
topology: tpu7x:2x2x1
jax: 0.10.0
libtpu: 0.0.40
codegen_flags: <defaults>
</compile_context>

<pallas_src>
import functools
import math

import numpy as np
import jax
import jax.numpy as jnp
from jax import lax
from jax.experimental import pallas as pl
from jax.experimental.pallas import tpu as pltpu


# --------------------------------------------------------------------------------------
# helpers
# --------------------------------------------------------------------------------------
def _round_up(x, m):
    return ((x + m - 1) // m) * m


def _layernorm_ref(x, gamma, beta, eps=1e-12):
    """Two-pass LayerNorm exactly as in the PyTorch module (pure-JAX reference)."""
    u = jnp.mean(x, axis=-1, keepdims=True)
    s = jnp.mean((x - u) ** 2, axis=-1, keepdims=True)
    return gamma * ((x - u) / jnp.sqrt(s + eps)) + beta


def make_dft_matrices(S, Fp, dtype=jnp.bfloat16):
    """Fused, zero-padded real-DFT / inverse real-DFT matrices (ortho norm).

    Forward (2*Fp, S): rows [0, F)  = Re(rfft) basis, rows [Fp, Fp+F) = Im(rfft) basis.
    Inverse (S, 2*Fp): cols [0, F)  = Re coefficients (with Hermitian doubling factor),
                       cols [Fp, Fp+F) = Im coefficients.  Padding rows/cols are zero.
    """
    F = S // 2 + 1
    n = np.arange(S)
    k = np.arange(F)

    theta = 2.0 * np.pi * np.outer(k, n) / S                     # (F, S)
    dfwd = np.zeros((2 * Fp, S), np.float32)
    dfwd[:F] = np.cos(theta) / np.sqrt(S)                        # Re part of rfft
    dfwd[Fp:Fp + F] = -np.sin(theta) / np.sqrt(S)                # Im part of rfft

    c = np.full((F,), 2.0)
    c[0] = 1.0
    if S % 2 == 0:
        c[-1] = 1.0                                              # Nyquist bin not doubled
    theta_i = 2.0 * np.pi * np.outer(n, k) / S                   # (S, F)
    dinv = np.zeros((S, 2 * Fp), np.float32)
    dinv[:, :F] = np.cos(theta_i) * c / np.sqrt(S)
    dinv[:, Fp:Fp + F] = -np.sin(theta_i) * c / np.sqrt(S)

    return jnp.asarray(dfwd, dtype), jnp.asarray(dinv, dtype)


def _row_chunk_target():
    """Generation-aware MLP row-chunk target: 512 on v6e, 256 on v5e / v7x."""
    try:
        kind = jax.devices()[0].device_kind.lower()
    except Exception:
        return 256
    if "v6" in kind or "trillium" in kind:
        return 512
    return 256


def _pick_row_chunk(S, target):
    """Largest divisor of S that is <= target (preferring multiples of 16, then 8)."""
    if S <= target:
        return S
    best8, best_any = None, None
    for c in range(target, 0, -1):
        if S % c:
            continue
        if c % 16 == 0:
            return c
        if c % 8 == 0 and best8 is None:
            best8 = c
        if best_any is None:
            best_any = c
    if best8 is not None:
        return best8
    return best_any if best_any is not None else S


def _vmem_limit_bytes(S, Hp, Ip, Fp, chunk):
    """Explicit scoped-VMEM limit sized to the resident set (clamped to chip capacity)."""
    bf2, f4 = 2, 4
    two_fp = 2 * Fp
    # Grid-invariant inputs: single-buffered (pl.Buffered(1)).
    consts = (two_fp * S + S * two_fp) * bf2                     # dfwd, dinv (bf16)
    consts += 2 * two_fp * Hp * f4                               # stacked filter weights
    consts += 2 * Hp * Ip * bf2                                  # w1, w2 (bf16)
    consts += (Ip + 5 * Hp) * f4                                 # biases + LN params
    io = 2 * 2 * S * Hp * f4                                     # x + out blocks, double-buffered
    work = (2 * two_fp * Hp * f4 + two_fp * Hp * bf2             # xs, ys (f32) + ys (bf16)
            + S * Hp * bf2                                       # bf16 copy of x for fwd DFT
            + 3 * chunk * Ip * f4                                # z1, a (+bf16 copy)
            + 6 * chunk * Hp * f4)                               # y_c, h1_c, z2, LN temps
    want = max(32 * 2 ** 20, int(1.5 * (consts + io + work)))
    try:
        cap = pltpu.get_tpu_info().vmem_capacity_bytes
    except Exception:
        cap = 64 * 2 ** 20                                       # conservative (v7x)
    return int(min(want, int(0.85 * cap)))


def _const_spec(shape):
    """BlockSpec for a grid-invariant input; single-buffered when the API allows it."""
    nd = len(shape)
    idx = lambda b, _nd=nd: (0,) * _nd
    if hasattr(pl, "Buffered"):
        try:
            return pl.BlockSpec(shape, idx, pipeline_mode=pl.Buffered(1))
        except TypeError:
            pass
    return pl.BlockSpec(shape, idx)


# --------------------------------------------------------------------------------------
# kernel
# --------------------------------------------------------------------------------------
def layer_kernel(x_ref, dfwd_ref, dinv_ref, wa_ref, wb_ref,
                 g1_ref, b1_ref, w1_ref, bias1_ref, w2_ref, bias2_ref,
                 g2_ref, b2_ref, o_ref, *, fp, chunk_s, true_h, approx_gelu):
    S, Hp = x_ref.shape
    n_chunks = S // chunk_s
    inv_h = 1.0 / float(true_h)
    eps = 1e-12

    # Lane mask (hoisted): only needed when H was padded to a multiple of 128.
    if Hp != true_h:
        lane = lax.broadcasted_iota(jnp.int32, (1, Hp), 1)
        lane_mask = (lane < true_h).astype(jnp.float32)
    else:
        lane_mask = None

    def layernorm(x, gamma, beta):
        # Two-pass LN (as in the PyTorch module); sums over padded lanes are exact
        # because padded inputs are zero, and the mask zeroes padded lanes of (x - m).
        m = jnp.sum(x, axis=-1, keepdims=True) * inv_h
        xc = x - m
        if lane_mask is not None:
            xc = xc * lane_mask
        var = jnp.sum(xc * xc, axis=-1, keepdims=True) * inv_h
        return gamma * (xc * lax.rsqrt(var + eps)) + beta

    # ---- FilterLayer: rfft along seq as ONE fused MXU matmul (bf16 operands, f32 acc) ----
    xs = jnp.dot(dfwd_ref[...], x_ref[...].astype(jnp.bfloat16),
                 preferred_element_type=jnp.float32)                         # (2Fp, Hp) = [Re; Im]

    # Complex multiply with the learned filter, stacked form (roll uses the XLU slot):
    #   [yr; yi] = xs * [wr; wr] + roll(xs, Fp) * [-wi; wi]
    ys = xs * wa_ref[...] + pltpu.roll(xs, shift=fp, axis=0) * wb_ref[...]   # (2Fp, Hp)
    ys_bf = ys.astype(jnp.bfloat16)          # small, stays resident across chunks

    # Weights / params hoisted out of the chunk loop.
    w1 = w1_ref[...]            # (Hp, Ip) bf16
    w2 = w2_ref[...]            # (Ip, Hp) bf16
    bias1 = bias1_ref[...]
    bias2 = bias2_ref[...]
    g1 = g1_ref[...]
    b1 = b1_ref[...]
    g2 = g2_ref[...]
    b2 = b2_ref[...]
    inv_sqrt2 = 1.0 / math.sqrt(2.0)

    # ---- Fused irfft + residual + LN1 + Intermediate (MLP), row-chunked over seq ----
    def chunk_body(ci):
        start = ci * chunk_s
        if not isinstance(start, int):
            start = pl.multiple_of(start, chunk_s)
        rows = pl.ds(start, chunk_s)

        x_c = x_ref[rows, :].astype(jnp.float32)                             # (chunk, Hp)
        # irfft for this row-chunk as one MXU matmul (K = 2*Fp, sublane-aligned padding).
        y_c = jnp.dot(dinv_ref[rows, :], ys_bf,
                      preferred_element_type=jnp.float32)                    # (chunk, Hp)
        # out_dropout is identity (eval mode); residual + LayerNorm1.
        h1_c = layernorm(y_c + x_c, g1, b1)

        z1 = jnp.dot(h1_c.astype(jnp.bfloat16), w1,
                     preferred_element_type=jnp.float32) + bias1             # (chunk, Ip)
        if approx_gelu:
            a = jax.nn.gelu(z1, approximate=True)                            # EUP tanh path
        else:
            a = z1 * 0.5 * (1.0 + lax.erf(z1 * inv_sqrt2))                   # exact erf GELU
        z2 = jnp.dot(a.astype(jnp.bfloat16), w2,
                     preferred_element_type=jnp.float32) + bias2             # (chunk, Hp)
        # dropout = identity; residual + LayerNorm2; lane-dense store (Hp % 128 == 0).
        o_ref[rows, :] = layernorm(z2 + h1_c, g2, b2).astype(o_ref.dtype)

    if n_chunks == 1:
        chunk_body(0)
    else:
        def fori_body(ci, carry):
            chunk_body(ci)
            return carry
        lax.fori_loop(0, n_chunks, fori_body, 0)


# --------------------------------------------------------------------------------------
# wrapper
# --------------------------------------------------------------------------------------
def layer_forward(x, params, row_chunk=None, out_dtype=None, approx_gelu=False):
    """Pallas forward for `Layer` (FilterLayer + Intermediate), eval mode.

    `out_dtype` may be set to jnp.bfloat16 to halve output HBM traffic if the
    surrounding model tolerates it; defaults to the input dtype.
    """
    B, S, H = x.shape
    F = S // 2 + 1
    Fp = _round_up(F, 8)                       # pad rfft bin count to a sublane multiple
    Hp = H if H % 128 == 0 else _round_up(H, 128)   # lane-dense hidden dim
    I = 4 * H
    Ip = I if I % 128 == 0 else _round_up(I, 128)   # lane-dense intermediate dim
    chunk = _pick_row_chunk(S, _row_chunk_target()) if row_chunk is None else int(row_chunk)
    assert S % chunk == 0, "row_chunk must divide the sequence length"
    out_dtype = x.dtype if out_dtype is None else out_dtype

    dfwd, dinv = make_dft_matrices(S, Fp)      # bf16 (documented precision/VMEM trade-off)

    def pad2(a, r, c):
        pr, pc = r - a.shape[0], c - a.shape[1]
        return a if (pr == 0 and pc == 0) else jnp.pad(a, ((0, pr), (0, pc)))

    # Pad + stack the complex filter weight for the stacked complex multiply.
    wr = pad2(params["wr"], Fp, Hp)
    wi = pad2(params["wi"], Fp, Hp)
    wa = jnp.concatenate([wr, wr], axis=0)                     # (2Fp, Hp)
    wb = jnp.concatenate([-wi, wi], axis=0)                    # (2Fp, Hp)

    # MLP weights in bf16 (f32 accumulation on the MXU); zero-pad to lane-dense dims.
    w1 = pad2(params["w1"], Hp, Ip).astype(jnp.bfloat16)
    w2 = pad2(params["w2"], Ip, Hp).astype(jnp.bfloat16)
    bias1 = pad2(params["bias1"], 1, Ip)
    bias2 = pad2(params["bias2"], 1, Hp)
    g1 = pad2(params["g1"], 1, Hp)
    b1 = pad2(params["b1"], 1, Hp)
    g2 = pad2(params["g2"], 1, Hp)
    b2 = pad2(params["b2"], 1, Hp)

    x_p = x if Hp == H else jnp.pad(x, ((0, 0), (0, 0), (0, Hp - H)))

    in_specs = [
        pl.BlockSpec((None, S, Hp), lambda b: (b, 0, 0)),      # x (batch-squeezed, pipelined)
        _const_spec((2 * Fp, S)),                              # fused forward DFT (bf16)
        _const_spec((S, 2 * Fp)),                              # fused inverse DFT (bf16)
        _const_spec((2 * Fp, Hp)), _const_spec((2 * Fp, Hp)),  # stacked filter weights
        _const_spec((1, Hp)), _const_spec((1, Hp)),            # LayerNorm1 gamma, beta
        _const_spec((Hp, Ip)), _const_spec((1, Ip)),           # dense_1 W (bf16), b
        _const_spec((Ip, Hp)), _const_spec((1, Hp)),           # dense_2 W (bf16), b
        _const_spec((1, Hp)), _const_spec((1, Hp)),            # LayerNorm2 gamma, beta
    ]
    out_spec = pl.BlockSpec((None, S, Hp), lambda b: (b, 0, 0))

    kernel = functools.partial(layer_kernel, fp=Fp, chunk_s=chunk, true_h=H,
                               approx_gelu=approx_gelu)

    fn = pl.pallas_call(
        kernel,
        out_shape=jax.ShapeDtypeStruct((B, S, Hp), out_dtype),
        grid_spec=pltpu.PrefetchScalarGridSpec(
            num_scalar_prefetch=0,
            grid=(B,),
            in_specs=in_specs,
            out_specs=out_spec,
        ),
        compiler_params=pltpu.CompilerParams(
            dimension_semantics=("parallel",),
            vmem_limit_bytes=_vmem_limit_bytes(S, Hp, Ip, Fp, chunk),
        ),
    )
    out = fn(x_p, dfwd, dinv, wa, wb, g1, b1, w1, bias1, w2, bias2, g2, b2)
    if Hp != H:
        out = out[..., :H]
    return out


# --------------------------------------------------------------------------------------
# pure-JAX reference (mirrors the PyTorch module in eval mode)
# --------------------------------------------------------------------------------------
def reference_forward(x, params):
    B, S, H = x.shape
    w = params["wr"] + 1j * params["wi"]                       # (F, H) complex weight
    xf = jnp.fft.rfft(x, axis=1, norm="ortho")
    y = jnp.fft.irfft(xf * w[None], n=S, axis=1, norm="ortho")
    h1 = _layernorm_ref(y + x, params["g1"], params["b1"])
    z1 = h1 @ params["w1"] + params["bias1"]
    a = z1 * 0.5 * (1.0 + jax.lax.erf(z1 / math.sqrt(2.0)))
    z2 = a @ params["w2"] + params["bias2"]
    return _layernorm_ref(z2 + h1, params["g2"], params["b2"])


def init_params(key, S, H):
    F = S // 2 + 1
    k = jax.random.split(key, 5)
    cw = jax.random.normal(k[0], (F, H, 2), jnp.float32) * 0.02   # complex_weight (batch dim squeezed)
    bound1 = 1.0 / math.sqrt(H)
    bound2 = 1.0 / math.sqrt(4 * H)
    return {
        "wr": cw[..., 0], "wi": cw[..., 1],
        "g1": jnp.ones((1, H), jnp.float32), "b1": jnp.zeros((1, H), jnp.float32),
        "w1": jax.random.uniform(k[1], (H, 4 * H), jnp.float32, -bound1, bound1),
        "bias1": jax.random.uniform(k[2], (1, 4 * H), jnp.float32, -bound1, bound1),
        "w2": jax.random.uniform(k[3], (4 * H, H), jnp.float32, -bound2, bound2),
        "bias2": jax.random.uniform(k[4], (1, H), jnp.float32, -bound2, bound2),
        "g2": jnp.ones((1, H), jnp.float32), "b2": jnp.zeros((1, H), jnp.float32),
    }


if __name__ == "__main__":
    # Main check: small shapes, single row-chunk (exercises H -> 128 lane padding).
    B, S, H = 2, 8, 32          # batch, max_seq_len, hidden_size
    key = jax.random.PRNGKey(0)
    kx, kp = jax.random.split(key)
    x = jax.random.normal(kx, (B, S, H), jnp.float32)
    params = init_params(kp, S, H)
    # attention_mask is an unused argument of Layer.forward; omitted.

    out = jax.block_until_ready(layer_forward(x, params))
    ref = reference_forward(x, params)
    # bf16 MXU operands (f32 accumulation) -> slightly looser tolerance than pure f32.
    np.testing.assert_allclose(np.asarray(out), np.asarray(ref), rtol=5e-2, atol=5e-2)

    # Second check: exercises the fused irfft/LN1 + MLP chunk loop (2 chunks of 16 rows).
    B2, S2, H2 = 2, 32, 32
    kx2, kp2 = jax.random.split(jax.random.PRNGKey(1))
    x2 = jax.random.normal(kx2, (B2, S2, H2), jnp.float32)
    params2 = init_params(kp2, S2, H2)
    out2 = jax.block_until_ready(layer_forward(x2, params2, row_chunk=16))
    ref2 = reference_forward(x2, params2)
    np.testing.assert_allclose(np.asarray(out2), np.asarray(ref2), rtol=5e-2, atol=5e-2)

    print("KERNEL_OK")
</pallas_src>

<mosaic_0001>
module attributes {stable_mosaic.version = 11 : i64} {
  func.func @layer_kernel(%arg0: i32, %arg1: memref<1x8x128xf32, #tpu.memory_space<vmem>>, %arg2: memref<16x8xbf16, #tpu.memory_space<vmem>>, %arg3: memref<8x16xbf16, #tpu.memory_space<vmem>>, %arg4: memref<16x128xf32, #tpu.memory_space<vmem>>, %arg5: memref<16x128xf32, #tpu.memory_space<vmem>>, %arg6: memref<1x128xf32, #tpu.memory_space<vmem>>, %arg7: memref<1x128xf32, #tpu.memory_space<vmem>>, %arg8: memref<128x128xbf16, #tpu.memory_space<vmem>>, %arg9: memref<1x128xf32, #tpu.memory_space<vmem>>, %arg10: memref<128x128xbf16, #tpu.memory_space<vmem>>, %arg11: memref<1x128xf32, #tpu.memory_space<vmem>>, %arg12: memref<1x128xf32, #tpu.memory_space<vmem>>, %arg13: memref<1x128xf32, #tpu.memory_space<vmem>>, %arg14: memref<1x8x128xf32, #tpu.memory_space<vmem>>) attributes {dimension_semantics = [#tpu.dimension_semantics<parallel>], iteration_bounds = array<i64: 2>, scalar_prefetch = 0 : i64, scratch_operands = 0 : i64, tpu.core_type = #tpu.core_type<tc>, window_params = [{transform_indices = @transform_0, window_bounds = array<i64: 1, 8, 128>}, {pipeline_mode = #tpu.pipeline_mode<synchronous>, transform_indices = @transform_1, window_bounds = array<i64: 16, 8>}, {pipeline_mode = #tpu.pipeline_mode<synchronous>, transform_indices = @transform_2, window_bounds = array<i64: 8, 16>}, {pipeline_mode = #tpu.pipeline_mode<synchronous>, transform_indices = @transform_3, window_bounds = array<i64: 16, 128>}, {pipeline_mode = #tpu.pipeline_mode<synchronous>, transform_indices = @transform_4, window_bounds = array<i64: 16, 128>}, {pipeline_mode = #tpu.pipeline_mode<synchronous>, transform_indices = @transform_5, window_bounds = array<i64: 1, 128>}, {pipeline_mode = #tpu.pipeline_mode<synchronous>, transform_indices = @transform_6, window_bounds = array<i64: 1, 128>}, {pipeline_mode = #tpu.pipeline_mode<synchronous>, transform_indices = @transform_7, window_bounds = array<i64: 128, 128>}, {pipeline_mode = #tpu.pipeline_mode<synchronous>, transform_indices = @transform_8, window_bounds = array<i64: 1, 128>}, {pipeline_mode = #tpu.pipeline_mode<synchronous>, transform_indices = @transform_9, window_bounds = array<i64: 128, 128>}, {pipeline_mode = #tpu.pipeline_mode<synchronous>, transform_indices = @transform_10, window_bounds = array<i64: 1, 128>}, {pipeline_mode = #tpu.pipeline_mode<synchronous>, transform_indices = @transform_11, window_bounds = array<i64: 1, 128>}, {pipeline_mode = #tpu.pipeline_mode<synchronous>, transform_indices = @transform_12, window_bounds = array<i64: 1, 128>}, {transform_indices = @transform_13, window_bounds = array<i64: 1, 8, 128>}]} {
    %0 = tpu.iota {dimensions = array<i32: 1>} : vector<1x128xi32>
    %c32_i32 = arith.constant 32 : i32
    %1 = vector.broadcast %c32_i32 : i32 to vector<1x128xi32>
    %2 = arith.cmpi slt, %0, %1 : vector<1x128xi32>
    %3 = arith.extui %2 : vector<1x128xi1> to vector<1x128xi32>
    %4 = arith.sitofp %3 : vector<1x128xi32> to vector<1x128xf32>
    %c0 = arith.constant 0 : index
    %c0_0 = arith.constant 0 : index
    %5 = vector.load %arg2[%c0, %c0_0] : memref<16x8xbf16, #tpu.memory_space<vmem>>, vector<16x8xbf16>
    %c0_1 = arith.constant 0 : index
    %c0_2 = arith.constant 0 : index
    %c0_3 = arith.constant 0 : index
    %6 = vector.load %arg1[%c0_1, %c0_2, %c0_3] : memref<1x8x128xf32, #tpu.memory_space<vmem>>, vector<1x8x128xf32>
    %7 = vector.shape_cast %6 : vector<1x8x128xf32> to vector<8x128xf32>
    %8 = arith.truncf %7 : vector<8x128xf32> to vector<8x128xbf16>
    %cst = arith.constant dense<0.000000e+00> : vector<16x128xf32>
    %9 = tpu.matmul %5, %8, %cst {dimension_numbers = #tpu.dot_dimension_numbers<[1], [0], [0], [1], [0, 0, 1, 1], [], []>} : vector<16x8xbf16>, vector<8x128xbf16>, vector<16x128xf32> -> vector<16x128xf32>
    %c0_4 = arith.constant 0 : index
    %c0_5 = arith.constant 0 : index
    %10 = vector.load %arg4[%c0_4, %c0_5] : memref<16x128xf32, #tpu.memory_space<vmem>>, vector<16x128xf32>
    %11 = arith.mulf %9, %10 : vector<16x128xf32>
    %c8_i32 = arith.constant 8 : i32
    %12 = tpu.dynamic_rotate %9 by %c8_i32 dim 0 : vector<16x128xf32>, i32 -> vector<16x128xf32>
    %c0_6 = arith.constant 0 : index
    %c0_7 = arith.constant 0 : index
    %13 = vector.load %arg5[%c0_6, %c0_7] : memref<16x128xf32, #tpu.memory_space<vmem>>, vector<16x128xf32>
    %14 = arith.mulf %12, %13 : vector<16x128xf32>
    %15 = arith.addf %11, %14 : vector<16x128xf32>
    %16 = arith.truncf %15 : vector<16x128xf32> to vector<16x128xbf16>
    %c0_8 = arith.constant 0 : index
    %c0_9 = arith.constant 0 : index
    %17 = vector.load %arg8[%c0_8, %c0_9] : memref<128x128xbf16, #tpu.memory_space<vmem>>, vector<128x128xbf16>
    %c0_10 = arith.constant 0 : index
    %c0_11 = arith.constant 0 : index
    %18 = vector.load %arg10[%c0_10, %c0_11] : memref<128x128xbf16, #tpu.memory_space<vmem>>, vector<128x128xbf16>
    %c0_12 = arith.constant 0 : index
    %c0_13 = arith.constant 0 : index
    %19 = vector.load %arg9[%c0_12, %c0_13] : memref<1x128xf32, #tpu.memory_space<vmem>>, vector<1x128xf32>
    %c0_14 = arith.constant 0 : index
    %c0_15 = arith.constant 0 : index
    %20 = vector.load %arg11[%c0_14, %c0_15] : memref<1x128xf32, #tpu.memory_space<vmem>>, vector<1x128xf32>
    %c0_16 = arith.constant 0 : index
    %c0_17 = arith.constant 0 : index
    %21 = vector.load %arg6[%c0_16, %c0_17] : memref<1x128xf32, #tpu.memory_space<vmem>>, vector<1x128xf32>
    %c0_18 = arith.constant 0 : index
    %c0_19 = arith.constant 0 : index
    %22 = vector.load %arg7[%c0_18, %c0_19] : memref<1x128xf32, #tpu.memory_space<vmem>>, vector<1x128xf32>
    %c0_20 = arith.constant 0 : index
    %c0_21 = arith.constant 0 : index
    %23 = vector.load %arg12[%c0_20, %c0_21] : memref<1x128xf32, #tpu.memory_space<vmem>>, vector<1x128xf32>
    %c0_22 = arith.constant 0 : index
    %c0_23 = arith.constant 0 : index
    %24 = vector.load %arg13[%c0_22, %c0_23] : memref<1x128xf32, #tpu.memory_space<vmem>>, vector<1x128xf32>
    %c0_24 = arith.constant 0 : index
    %c0_25 = arith.constant 0 : index
    %c0_26 = arith.constant 0 : index
    %25 = vector.load %arg1[%c0_24, %c0_25, %c0_26] : memref<1x8x128xf32, #tpu.memory_space<vmem>>, vector<1x8x128xf32>
    %26 = vector.shape_cast %25 : vector<1x8x128xf32> to vector<8x128xf32>
    %c0_27 = arith.constant 0 : index
    %c0_28 = arith.constant 0 : index
    %27 = vector.load %arg3[%c0_27, %c0_28] : memref<8x16xbf16, #tpu.memory_space<vmem>>, vector<8x16xbf16>
    %cst_29 = arith.constant dense<0.000000e+00> : vector<8x128xf32>
    %28 = tpu.matmul %27, %16, %cst_29 {dimension_numbers = #tpu.dot_dimension_numbers<[1], [0], [0], [1], [0, 0, 1, 1], [], []>} : vector<8x16xbf16>, vector<16x128xbf16>, vector<8x128xf32> -> vector<8x128xf32>
    %29 = arith.addf %28, %26 : vector<8x128xf32>
    %cst_30 = arith.constant dense<0.000000e+00> : vector<8xf32>
    %30 = vector.multi_reduction <add>, %29, %cst_30 [1] : vector<8x128xf32> to vector<8xf32>
    %31 = vector.shape_cast %30 : vector<8xf32> to vector<8x1xf32>
    %cst_31 = arith.constant 3.125000e-02 : f32
    %32 = vector.broadcast %cst_31 : f32 to vector<8x1xf32>
    %33 = arith.mulf %31, %32 : vector<8x1xf32>
    %34 = vector.broadcast %33 : vector<8x1xf32> to vector<8x128xf32>
    %35 = arith.subf %29, %34 : vector<8x128xf32>
    %36 = vector.broadcast %4 : vector<1x128xf32> to vector<8x128xf32>
    %37 = arith.mulf %35, %36 : vector<8x128xf32>
    %38 = arith.mulf %37, %37 : vector<8x128xf32>
    %cst_32 = arith.constant dense<0.000000e+00> : vector<8xf32>
    %39 = vector.multi_reduction <add>, %38, %cst_32 [1] : vector<8x128xf32> to vector<8xf32>
    %40 = vector.shape_cast %39 : vector<8xf32> to vector<8x1xf32>
    %cst_33 = arith.constant 3.125000e-02 : f32
    %41 = vector.broadcast %cst_33 : f32 to vector<8x1xf32>
    %42 = arith.mulf %40, %41 : vector<8x1xf32>
    %cst_34 = arith.constant 9.99999996E-13 : f32
    %43 = vector.broadcast %cst_34 : f32 to vector<8x1xf32>
    %44 = arith.addf %42, %43 : vector<8x1xf32>
    %45 = math.rsqrt %44 : vector<8x1xf32>
    %46 = vector.broadcast %45 : vector<8x1xf32> to vector<8x128xf32>
    %47 = arith.mulf %37, %46 : vector<8x128xf32>
    %48 = vector.broadcast %21 : vector<1x128xf32> to vector<8x128xf32>
    %49 = arith.mulf %48, %47 : vector<8x128xf32>
    %50 = vector.broadcast %22 : vector<1x128xf32> to vector<8x128xf32>
    %51 = arith.addf %49, %50 : vector<8x128xf32>
    %52 = arith.truncf %51 : vector<8x128xf32> to vector<8x128xbf16>
    %cst_35 = arith.constant dense<0.000000e+00> : vector<8x128xf32>
    %53 = tpu.matmul %52, %17, %cst_35 {dimension_numbers = #tpu.dot_dimension_numbers<[1], [0], [0], [1], [0, 0, 1, 1], [], []>} : vector<8x128xbf16>, vector<128x128xbf16>, vector<8x128xf32> -> vector<8x128xf32>
    %54 = vector.broadcast %19 : vector<1x128xf32> to vector<8x128xf32>
    %55 = arith.addf %53, %54 : vector<8x128xf32>
    %cst_36 = arith.constant 5.000000e-01 : f32
    %56 = vector.broadcast %cst_36 : f32 to vector<8x128xf32>
    %57 = arith.mulf %55, %56 : vector<8x128xf32>
    %cst_37 = arith.constant 0.707106769 : f32
    %58 = vector.broadcast %cst_37 : f32 to vector<8x128xf32>
    %59 = arith.mulf %55, %58 : vector<8x128xf32>
    %60 = math.erf %59 : vector<8x128xf32>
    %cst_38 = arith.constant 1.000000e+00 : f32
    %61 = vector.broadcast %cst_38 : f32 to vector<8x128xf32>
    %62 = arith.addf %61, %60 : vector<8x128xf32>
    %63 = arith.mulf %57, %62 : vector<8x128xf32>
    %64 = arith.truncf %63 : vector<8x128xf32> to vector<8x128xbf16>
    %cst_39 = arith.constant dense<0.000000e+00> : vector<8x128xf32>
    %65 = tpu.matmul %64, %18, %cst_39 {dimension_numbers = #tpu.dot_dimension_numbers<[1], [0], [0], [1], [0, 0, 1, 1], [], []>} : vector<8x128xbf16>, vector<128x128xbf16>, vector<8x128xf32> -> vector<8x128xf32>
    %66 = vector.broadcast %20 : vector<1x128xf32> to vector<8x128xf32>
    %67 = arith.addf %65, %66 : vector<8x128xf32>
    %68 = arith.addf %67, %51 : vector<8x128xf32>
    %cst_40 = arith.constant dense<0.000000e+00> : vector<8xf32>
    %69 = vector.multi_reduction <add>, %68, %cst_40 [1] : vector<8x128xf32> to vector<8xf32>
    %70 = vector.shape_cast %69 : vector<8xf32> to vector<8x1xf32>
    %cst_41 = arith.constant 3.125000e-02 : f32
    %71 = vector.broadcast %cst_41 : f32 to vector<8x1xf32>
    %72 = arith.mulf %70, %71 : vector<8x1xf32>
    %73 = vector.broadcast %72 : vector<8x1xf32> to vector<8x128xf32>
    %74 = arith.subf %68, %73 : vector<8x128xf32>
    %75 = vector.broadcast %4 : vector<1x128xf32> to vector<8x128xf32>
    %76 = arith.mulf %74, %75 : vector<8x128xf32>
    %77 = arith.mulf %76, %76 : vector<8x128xf32>
    %cst_42 = arith.constant dense<0.000000e+00> : vector<8xf32>
    %78 = vector.multi_reduction <add>, %77, %cst_42 [1] : vector<8x128xf32> to vector<8xf32>
    %79 = vector.shape_cast %78 : vector<8xf32> to vector<8x1xf32>
    %cst_43 = arith.constant 3.125000e-02 : f32
    %80 = vector.broadcast %cst_43 : f32 to vector<8x1xf32>
    %81 = arith.mulf %79, %80 : vector<8x1xf32>
    %cst_44 = arith.constant 9.99999996E-13 : f32
    %82 = vector.broadcast %cst_44 : f32 to vector<8x1xf32>
    %83 = arith.addf %81, %82 : vector<8x1xf32>
    %84 = math.rsqrt %83 : vector<8x1xf32>
    %85 = vector.broadcast %84 : vector<8x1xf32> to vector<8x128xf32>
    %86 = arith.mulf %76, %85 : vector<8x128xf32>
    %87 = vector.broadcast %23 : vector<1x128xf32> to vector<8x128xf32>
    %88 = arith.mulf %87, %86 : vector<8x128xf32>
    %89 = vector.broadcast %24 : vector<1x128xf32> to vector<8x128xf32>
    %90 = arith.addf %88, %89 : vector<8x128xf32>
    %c0_45 = arith.constant 0 : index
    %c0_46 = arith.constant 0 : index
    %c0_47 = arith.constant 0 : index
    %91 = vector.load %arg14[%c0_45, %c0_46, %c0_47] : memref<1x8x128xf32, #tpu.memory_space<vmem>>, vector<1x8x128xf32>
    %92 = vector.shape_cast %91 : vector<1x8x128xf32> to vector<8x128xf32>
    %93 = vector.shape_cast %90 : vector<8x128xf32> to vector<1x8x128xf32>
    tpu.vector_store %arg14[%c0_45, %c0_46, %c0_47], %93 {strides = array<i32>} : memref<1x8x128xf32, #tpu.memory_space<vmem>>, vector<1x8x128xf32>,
    return
  }
  func.func @transform_0(%arg0: i32) -> (i32, i32, i32) {
    %c0_i32 = arith.constant 0 : i32
    %c0_i32_0 = arith.constant 0 : i32
    %c0_i32_1 = arith.constant 0 : i32
    return %arg0, %c0_i32, %c0_i32_0 : i32, i32, i32
  }
  func.func @transform_1(%arg0: i32) -> (i32, i32) {
    %c0_i32 = arith.constant 0 : i32
    %c0_i32_0 = arith.constant 0 : i32
    %c0_i32_1 = arith.constant 0 : i32
    return %c0_i32, %c0_i32_0 : i32, i32
  }
  func.func @transform_2(%arg0: i32) -> (i32, i32) {
    %c0_i32 = arith.constant 0 : i32
    %c0_i32_0 = arith.constant 0 : i32
    %c0_i32_1 = arith.constant 0 : i32
    return %c0_i32, %c0_i32_0 : i32, i32
  }
  func.func @transform_3(%arg0: i32) -> (i32, i32) {
    %c0_i32 = arith.constant 0 : i32
    %c0_i32_0 = arith.constant 0 : i32
    %c0_i32_1 = arith.constant 0 : i32
    return %c0_i32, %c0_i32_0 : i32, i32
  }
  func.func @transform_4(%arg0: i32) -> (i32, i32) {
    %c0_i32 = arith.constant 0 : i32
    %c0_i32_0 = arith.constant 0 : i32
    %c0_i32_1 = arith.constant 0 : i32
    return %c0_i32, %c0_i32_0 : i32, i32
  }
  func.func @transform_5(%arg0: i32) -> (i32, i32) {
    %c0_i32 = arith.constant 0 : i32
    %c0_i32_0 = arith.constant 0 : i32
    %c0_i32_1 = arith.constant 0 : i32
    return %c0_i32, %c0_i32_0 : i32, i32
  }
  func.func @transform_6(%arg0: i32) -> (i32, i32) {
    %c0_i32 = arith.constant 0 : i32
    %c0_i32_0 = arith.constant 0 : i32
    %c0_i32_1 = arith.constant 0 : i32
    return %c0_i32, %c0_i32_0 : i32, i32
  }
  func.func @transform_7(%arg0: i32) -> (i32, i32) {
    %c0_i32 = arith.constant 0 : i32
    %c0_i32_0 = arith.constant 0 : i32
    %c0_i32_1 = arith.constant 0 : i32
    return %c0_i32, %c0_i32_0 : i32, i32
  }
  func.func @transform_8(%arg0: i32) -> (i32, i32) {
    %c0_i32 = arith.constant 0 : i32
    %c0_i32_0 = arith.constant 0 : i32
    %c0_i32_1 = arith.constant 0 : i32
    return %c0_i32, %c0_i32_0 : i32, i32
  }
  func.func @transform_9(%arg0: i32) -> (i32, i32) {
    %c0_i32 = arith.constant 0 : i32
    %c0_i32_0 = arith.constant 0 : i32
    %c0_i32_1 = arith.constant 0 : i32
    return %c0_i32, %c0_i32_0 : i32, i32
  }
  func.func @transform_10(%arg0: i32) -> (i32, i32) {
    %c0_i32 = arith.constant 0 : i32
    %c0_i32_0 = arith.constant 0 : i32
    %c0_i32_1 = arith.constant 0 : i32
    return %c0_i32, %c0_i32_0 : i32, i32
  }
  func.func @transform_11(%arg0: i32) -> (i32, i32) {
    %c0_i32 = arith.constant 0 : i32
    %c0_i32_0 = arith.constant 0 : i32
    %c0_i32_1 = arith.constant 0 : i32
    return %c0_i32, %c0_i32_0 : i32, i32
  }
  func.func @transform_12(%arg0: i32) -> (i32, i32) {
    %c0_i32 = arith.constant 0 : i32
    %c0_i32_0 = arith.constant 0 : i32
    %c0_i32_1 = arith.constant 0 : i32
    return %c0_i32, %c0_i32_0 : i32, i32
  }
  func.func @transform_13(%arg0: i32) -> (i32, i32, i32) {
    %c0_i32 = arith.constant 0 : i32
    %c0_i32_0 = arith.constant 0 : i32
    %c0_i32_1 = arith.constant 0 : i32
    return %arg0, %c0_i32, %c0_i32_0 : i32, i32, i32
  }
}

</mosaic_0001>

<llo_original>
// kernel: tpu_custom_call.1
$region0: #{tpu_custom_call.1}
  #allocation0 [shape = 'u32[]', space=smem, size = 0x4, offset = 0x4, fixed_abs, tag = 'smem constant byte address 0x4 - core index']
  #allocation1 [shape = 'u32[144,128]{1,0:T(1,128)}', space=vmem, size = 0x12000, scoped, tag = 'internal scratch']
  %s0 = inlined_call_operand.hbm [shape: f32[2,8,128], index: 0, kind: input, shape index: {}]
  %s1 = inlined_call_operand.vmem [shape: bf16[16,8], index: 1, kind: input, shape index: {}]
  %s2 = inlined_call_operand.vmem [shape: bf16[8,16], index: 2, kind: input, shape index: {}]
  %s3 = inlined_call_operand.vmem [shape: f32[16,128], index: 3, kind: input, shape index: {}]
  %s4 = inlined_call_operand.hbm [shape: f32[16,128], index: 4, kind: input, shape index: {}]
  %s5 = inlined_call_operand.vmem [shape: f32[1,128], index: 5, kind: input, shape index: {}]
  %s6 = inlined_call_operand.vmem [shape: f32[1,128], index: 6, kind: input, shape index: {}]
  %s7 = inlined_call_operand.hbm [shape: bf16[128,128], index: 7, kind: input, shape index: {}]
  %s8 = inlined_call_operand.vmem [shape: f32[1,128], index: 8, kind: input, shape index: {}]
  %s9 = inlined_call_operand.hbm [shape: bf16[128,128], index: 9, kind: input, shape index: {}]
  %s10 = inlined_call_operand.vmem [shape: f32[1,128], index: 10, kind: input, shape index: {}]
  %s11 = inlined_call_operand.vmem [shape: f32[1,128], index: 11, kind: input, shape index: {}]
  %s12 = inlined_call_operand.vmem [shape: f32[1,128], index: 12, kind: input, shape index: {}]
  %s13 = inlined_call_operand.hbm [shape: f32[2,8,128], index: 13, kind: output, shape index: {}]
  %s14 = sld [smem:[#allocation0]]
  $region101: #{tpu_custom_call.1} parent=0
    _
  %s16 = ssub.s32 1, %s14
  %s17 = scalar_select 0, %s16, %s14
  $region1: #{tpu_custom_call.1} parent=0
    #allocation2 [shape = 'u8[8192]{0}', space=vmem, size = 0x2000, scoped, tag = 'input window, operand 0']
    #allocation3 [shape = 's32[2]{0}', space=sflag, size = 0x8, scoped, tag = 'scoped memory for tpu_custom_call.1']
    #allocation4 [shape = 's32[2]{0}', space=sflag, size = 0x8, scoped, tag = 'scoped memory for tpu_custom_call.1']
    #allocation5 [shape = 'u8[8192]{0}', space=vmem, size = 0x2000, scoped, tag = 'input window, operand 4, single buffered']
    #allocation6 [shape = 's32[1]{0}', space=sflag, size = 0x4, scoped, tag = 'scoped memory for tpu_custom_call.1']
    #allocation7 [shape = 'u8[32768]{0}', space=vmem, size = 0x8000, scoped, tag = 'input window, operand 7, single buffered']
    #allocation8 [shape = 'u8[32768]{0}', space=vmem, size = 0x8000, scoped, tag = 'input window, operand 9, single buffered']
    #allocation9 [shape = 's32[1]{0}', space=sflag, size = 0x4, scoped, tag = 'scoped memory for tpu_custom_call.1']
    #allocation10 [shape = 'u8[8192]{0}', space=vmem, size = 0x2000, scoped, tag = 'output window, operand 0']
    %18 = vsyncpa [#allocation3], 0
    %s19 = scalar_lea.sflag [#allocation3], 1
    %20 = vsyncpa %s19, 0
    %21 = vsyncpa [#allocation6], 0
    %22 = vsyncpa [#allocation9], 0
    %23 = vsyncpa [#allocation4], 0
    %s24 = scalar_lea.sflag [#allocation4], 1
    %25 = vsyncpa %s24, 0
    loop: start=0, step=1, limit=4
    $region2: #{tpu_custom_call.1} parent=1 // loop_pre_header
      _
    $region3: #{tpu_custom_call.1} parent=1 // loop_header
      %s27 = sphi 0, %s31
      %p28 = scmp.ge.s32.totalorder %s27, 4
      %s37 = sphi 0, %s39
      %s40 = sphi 0, %s37
      %s41 = sphi 0, %s40
      %s57 = sphi 0, %s41
      %s61 = sphi 0, %s61
      %s63 = sphi 0, %s61
      %s64 = sphi 0, %s63
      %s78 = sphi 0, %s64
      %s82 = sphi 0, %s82
      %s84 = sphi 0, %s82
      %s85 = sphi 0, %s84
      %s99 = sphi 0, %s85
      %s103 = sphi 0, %s103
      %s105 = sphi 0, %s103
      %s106 = sphi 0, %s105
      %s120 = sphi 0, %s106
      %s124 = sphi 0, %s124
      %s126 = sphi 0, %s124
      %s127 = sphi 0, %s126
      %s141 = sphi 0, %s127
      %s145 = sphi 0, %s145
      %s147 = sphi 0, %s145
      %s148 = sphi 0, %s147
      %s162 = sphi 0, %s148
      %s166 = sphi 0, %s166
      %s168 = sphi 0, %s166
      %s169 = sphi 0, %s168
      %s183 = sphi 0, %s169
      %s187 = sphi 0, %s187
      %s189 = sphi 0, %s187
      %s190 = sphi 0, %s189
      %s204 = sphi 0, %s190
      %s208 = sphi 0, %s208
      %s210 = sphi 0, %s208
      %s211 = sphi 0, %s210
      %s225 = sphi 0, %s211
      %s229 = sphi 0, %s229
      %s231 = sphi 0, %s229
      %s232 = sphi 0, %s231
      %s246 = sphi 0, %s232
      %s250 = sphi 0, %s250
      %s252 = sphi 0, %s250
      %s253 = sphi 0, %s252
      %s267 = sphi 0, %s253
      %s271 = sphi 0, %s271
      %s273 = sphi 0, %s271
      %s274 = sphi 0, %s273
      %s288 = sphi 0, %s274
      %s292 = sphi 0, %s292
      %s294 = sphi 0, %s292
      %s295 = sphi 0, %s294
      %s309 = sphi 0, %s295
      %s315 = sphi 0, %s317
      %s318 = sphi 0, %s315
      %s319 = sphi 0, %s318
      %s335 = sphi 0, %s319
    $region4: #{tpu_custom_call.1} parent=1 // loop_header_branch
      %30 = sbr.rel (%p28) target = $region8
    $region5: #{tpu_custom_call.1} parent=1 // loop_body
      %s32 = ssub.s32 %s27, 1
      %s33 = ssub.s32 %s27, 2
      %s34 = sadd.s32 %s27, 1
      %s35 = ssub.s32 %s27, %s34
      %p36 = scmp.eq.s32.totalorder %s35, 0
      %s38 = sadd.s32 %s37, 1
      %s39 = scalar_select %p36, %s37, %s38
      %p42 = pneg %p36
      %p43 = scmp.eq.s32.totalorder %s27, 1
      %p44 = por %p42, %p43
      %p45 = scmp.ne.s32.totalorder %s37, %s40
      %p46 = scmp.eq.s32.totalorder %s27, 0
      %p47 = por %p45, %p46
      %p48 = scmp.ne.s32.totalorder %s37, %s40
      %p49 = scmp.eq.s32.totalorder %s32, 1
      %p50 = por %p48, %p49
      %p51 = scmp.ne.s32.totalorder %s40, %s41
      %p52 = scmp.eq.s32.totalorder %s32, 0
      %p53 = por %p51, %p52
      %p54 = scmp.ne.s32.totalorder %s40, %s41
      %p55 = scmp.eq.s32.totalorder %s33, 1
      %p56 = por %p54, %p55
      %p58 = scmp.ne.s32.totalorder %s41, %s57
      %p59 = scmp.eq.s32.totalorder %s33, 0
      %p60 = por %p58, %p59
      %s62 = sadd.s32 %s61, 1
      %p65 = scmp.eq.s32.totalorder %s27, 1
      %p66 = scmp.ne.s32.totalorder %s61, %s63
      %p67 = scmp.eq.s32.totalorder %s27, 0
      %p68 = por %p66, %p67
      %p69 = scmp.ne.s32.totalorder %s61, %s63
      %p70 = scmp.eq.s32.totalorder %s32, 1
      %p71 = por %p69, %p70
      %p72 = scmp.ne.s32.totalorder %s63, %s64
      %p73 = scmp.eq.s32.totalorder %s32, 0
      %p74 = por %p72, %p73
      %p75 = scmp.ne.s32.totalorder %s63, %s64
      %p76 = scmp.eq.s32.totalorder %s33, 1
      %p77 = por %p75, %p76
      %p79 = scmp.ne.s32.totalorder %s64, %s78
      %p80 = scmp.eq.s32.totalorder %s33, 0
      %p81 = por %p79, %p80
      %s83 = sadd.s32 %s82, 1
      %p86 = scmp.eq.s32.totalorder %s27, 1
      %p87 = scmp.ne.s32.totalorder %s82, %s84
      %p88 = scmp.eq.s32.totalorder %s27, 0
      %p89 = por %p87, %p88
      %p90 = scmp.ne.s32.totalorder %s82, %s84
      %p91 = scmp.eq.s32.totalorder %s32, 1
      %p92 = por %p90, %p91
      %p93 = scmp.ne.s32.totalorder %s84, %s85
      %p94 = scmp.eq.s32.totalorder %s32, 0
      %p95 = por %p93, %p94
      %p96 = scmp.ne.s32.totalorder %s84, %s85
      %p97 = scmp.eq.s32.totalorder %s33, 1
      %p98 = por %p96, %p97
      %p100 = scmp.ne.s32.totalorder %s85, %s99
      %p101 = scmp.eq.s32.totalorder %s33, 0
      %p102 = por %p100, %p101
      %s104 = sadd.s32 %s103, 1
      %p107 = scmp.eq.s32.totalorder %s27, 1
      %p108 = scmp.ne.s32.totalorder %s103, %s105
      %p109 = scmp.eq.s32.totalorder %s27, 0
      %p110 = por %p108, %p109
      %p111 = scmp.ne.s32.totalorder %s103, %s105
      %p112 = scmp.eq.s32.totalorder %s32, 1
      %p113 = por %p111, %p112
      %p114 = scmp.ne.s32.totalorder %s105, %s106
      %p115 = scmp.eq.s32.totalorder %s32, 0
      %p116 = por %p114, %p115
      %p117 = scmp.ne.s32.totalorder %s105, %s106
      %p118 = scmp.eq.s32.totalorder %s33, 1
      %p119 = por %p117, %p118
      %p121 = scmp.ne.s32.totalorder %s106, %s120
      %p122 = scmp.eq.s32.totalorder %s33, 0
      %p123 = por %p121, %p122
      %s125 = sadd.s32 %s124, 1
      %p128 = scmp.eq.s32.totalorder %s27, 1
      %p129 = scmp.ne.s32.totalorder %s124, %s126
      %p130 = scmp.eq.s32.totalorder %s27, 0
      %p131 = por %p129, %p130
      %p132 = scmp.ne.s32.totalorder %s124, %s126
      %p133 = scmp.eq.s32.totalorder %s32, 1
      %p134 = por %p132, %p133
      %p135 = scmp.ne.s32.totalorder %s126, %s127
      %p136 = scmp.eq.s32.totalorder %s32, 0
      %p137 = por %p135, %p136
      %p138 = scmp.ne.s32.totalorder %s126, %s127
      %p139 = scmp.eq.s32.totalorder %s33, 1
      %p140 = por %p138, %p139
      %p142 = scmp.ne.s32.totalorder %s127, %s141
      %p143 = scmp.eq.s32.totalorder %s33, 0
      %p144 = por %p142, %p143
      %s146 = sadd.s32 %s145, 1
      %p149 = scmp.eq.s32.totalorder %s27, 1
      %p150 = scmp.ne.s32.totalorder %s145, %s147
      %p151 = scmp.eq.s32.totalorder %s27, 0
      %p152 = por %p150, %p151
      %p153 = scmp.ne.s32.totalorder %s145, %s147
      %p154 = scmp.eq.s32.totalorder %s32, 1
      %p155 = por %p153, %p154
      %p156 = scmp.ne.s32.totalorder %s147, %s148
      %p157 = scmp.eq.s32.totalorder %s32, 0
      %p158 = por %p156, %p157
      %p159 = scmp.ne.s32.totalorder %s147, %s148
      %p160 = scmp.eq.s32.totalorder %s33, 1
      %p161 = por %p159, %p160
      %p163 = scmp.ne.s32.totalorder %s148, %s162
      %p164 = scmp.eq.s32.totalorder %s33, 0
      %p165 = por %p163, %p164
      %s167 = sadd.s32 %s166, 1
      %p170 = scmp.eq.s32.totalorder %s27, 1
      %p171 = scmp.ne.s32.totalorder %s166, %s168
      %p172 = scmp.eq.s32.totalorder %s27, 0
      %p173 = por %p171, %p172
      %p174 = scmp.ne.s32.totalorder %s166, %s168
      %p175 = scmp.eq.s32.totalorder %s32, 1
      %p176 = por %p174, %p175
      %p177 = scmp.ne.s32.totalorder %s168, %s169
      %p178 = scmp.eq.s32.totalorder %s32, 0
      %p179 = por %p177, %p178
      %p180 = scmp.ne.s32.totalorder %s168, %s169
      %p181 = scmp.eq.s32.totalorder %s33, 1
      %p182 = por %p180, %p181
      %p184 = scmp.ne.s32.totalorder %s169, %s183
      %p185 = scmp.eq.s32.totalorder %s33, 0
      %p186 = por %p184, %p185
      %s188 = sadd.s32 %s187, 1
      %p191 = scmp.eq.s32.totalorder %s27, 1
      %p192 = scmp.ne.s32.totalorder %s187, %s189
      %p193 = scmp.eq.s32.totalorder %s27, 0
      %p194 = por %p192, %p193
      %p195 = scmp.ne.s32.totalorder %s187, %s189
      %p196 = scmp.eq.s32.totalorder %s32, 1
      %p197 = por %p195, %p196
      %p198 = scmp.ne.s32.totalorder %s189, %s190
      %p199 = scmp.eq.s32.totalorder %s32, 0
      %p200 = por %p198, %p199
      %p201 = scmp.ne.s32.totalorder %s189, %s190
      %p202 = scmp.eq.s32.totalorder %s33, 1
      %p203 = por %p201, %p202
      %p205 = scmp.ne.s32.totalorder %s190, %s204
      %p206 = scmp.eq.s32.totalorder %s33, 0
      %p207 = por %p205, %p206
      %s209 = sadd.s32 %s208, 1
      %p212 = scmp.eq.s32.totalorder %s27, 1
      %p213 = scmp.ne.s32.totalorder %s208, %s210
      %p214 = scmp.eq.s32.totalorder %s27, 0
      %p215 = por %p213, %p214
      %p216 = scmp.ne.s32.totalorder %s208, %s210
      %p217 = scmp.eq.s32.totalorder %s32, 1
      %p218 = por %p216, %p217
      %p219 = scmp.ne.s32.totalorder %s210, %s211
      %p220 = scmp.eq.s32.totalorder %s32, 0
      %p221 = por %p219, %p220
      %p222 = scmp.ne.s32.totalorder %s210, %s211
      %p223 = scmp.eq.s32.totalorder %s33, 1
      %p224 = por %p222, %p223
      %p226 = scmp.ne.s32.totalorder %s211, %s225
      %p227 = scmp.eq.s32.totalorder %s33, 0
      %p228 = por %p226, %p227
      %s230 = sadd.s32 %s229, 1
      %p233 = scmp.eq.s32.totalorder %s27, 1
      %p234 = scmp.ne.s32.totalorder %s229, %s231
      %p235 = scmp.eq.s32.totalorder %s27, 0
      %p236 = por %p234, %p235
      %p237 = scmp.ne.s32.totalorder %s229, %s231
      %p238 = scmp.eq.s32.totalorder %s32, 1
      %p239 = por %p237, %p238
      %p240 = scmp.ne.s32.totalorder %s231, %s232
      %p241 = scmp.eq.s32.totalorder %s32, 0
      %p242 = por %p240, %p241
      %p243 = scmp.ne.s32.totalorder %s231, %s232
      %p244 = scmp.eq.s32.totalorder %s33, 1
      %p245 = por %p243, %p244
      %p247 = scmp.ne.s32.totalorder %s232, %s246
      %p248 = scmp.eq.s32.totalorder %s33, 0
      %p249 = por %p247, %p248
      %s251 = sadd.s32 %s250, 1
      %p254 = scmp.eq.s32.totalorder %s27, 1
      %p255 = scmp.ne.s32.totalorder %s250, %s252
      %p256 = scmp.eq.s32.totalorder %s27, 0
      %p257 = por %p255, %p256
      %p258 = scmp.ne.s32.totalorder %s250, %s252
      %p259 = scmp.eq.s32.totalorder %s32, 1
      %p260 = por %p258, %p259
      %p261 = scmp.ne.s32.totalorder %s252, %s253
      %p262 = scmp.eq.s32.totalorder %s32, 0
      %p263 = por %p261, %p262
      %p264 = scmp.ne.s32.totalorder %s252, %s253
      %p265 = scmp.eq.s32.totalorder %s33, 1
      %p266 = por %p264, %p265
      %p268 = scmp.ne.s32.totalorder %s253, %s267
      %p269 = scmp.eq.s32.totalorder %s33, 0
      %p270 = por %p268, %p269
      %s272 = sadd.s32 %s271, 1
      %p275 = scmp.eq.s32.totalorder %s27, 1
      %p276 = scmp.ne.s32.totalorder %s271, %s273
      %p277 = scmp.eq.s32.totalorder %s27, 0
      %p278 = por %p276, %p277
      %p279 = scmp.ne.s32.totalorder %s271, %s273
      %p280 = scmp.eq.s32.totalorder %s32, 1
      %p281 = por %p279, %p280
      %p282 = scmp.ne.s32.totalorder %s273, %s274
      %p283 = scmp.eq.s32.totalorder %s32, 0
      %p284 = por %p282, %p283
      %p285 = scmp.ne.s32.totalorder %s273, %s274
      %p286 = scmp.eq.s32.totalorder %s33, 1
      %p287 = por %p285, %p286
      %p289 = scmp.ne.s32.totalorder %s274, %s288
      %p290 = scmp.eq.s32.totalorder %s33, 0
      %p291 = por %p289, %p290
      %s293 = sadd.s32 %s292, 1
      %p296 = scmp.eq.s32.totalorder %s27, 1
      %p297 = scmp.ne.s32.totalorder %s292, %s294
      %p298 = scmp.eq.s32.totalorder %s27, 0
      %p299 = por %p297, %p298
      %p300 = scmp.ne.s32.totalorder %s292, %s294
      %p301 = scmp.eq.s32.totalorder %s32, 1
      %p302 = por %p300, %p301
      %p303 = scmp.ne.s32.totalorder %s294, %s295
      %p304 = scmp.eq.s32.totalorder %s32, 0
      %p305 = por %p303, %p304
      %p306 = scmp.ne.s32.totalorder %s294, %s295
      %p307 = scmp.eq.s32.totalorder %s33, 1
      %p308 = por %p306, %p307
      %p310 = scmp.ne.s32.totalorder %s295, %s309
      %p311 = scmp.eq.s32.totalorder %s33, 0
      %p312 = por %p310, %p311
      %s313 = ssub.s32 %s27, %s34
      %p314 = scmp.eq.s32.totalorder %s313, 0
      %s316 = sadd.s32 %s315, 1
      %s317 = scalar_select %p314, %s315, %s316
      %p320 = pneg %p314
      %p321 = scmp.eq.s32.totalorder %s27, 1
      %p322 = por %p320, %p321
      %p323 = scmp.ne.s32.totalorder %s315, %s318
      %p324 = scmp.eq.s32.totalorder %s27, 0
      %p325 = por %p323, %p324
      %p326 = scmp.ne.s32.totalorder %s315, %s318
      %p327 = scmp.eq.s32.totalorder %s32, 1
      %p328 = por %p326, %p327
      %p329 = scmp.ne.s32.totalorder %s318, %s319
      %p330 = scmp.eq.s32.totalorder %s32, 0
      %p331 = por %p329, %p330
      %p332 = scmp.ne.s32.totalorder %s318, %s319
      %p333 = scmp.eq.s32.totalorder %s33, 1
      %p334 = por %p332, %p333
      %p336 = scmp.ne.s32.totalorder %s319, %s335
      %p337 = scmp.eq.s32.totalorder %s33, 0
      %p338 = por %p336, %p337
      %p339 = scmp.le.s32.totalorder 1, %s27
      %p340 = scmp.lt.s32.totalorder %s27, 3
      %p341 = pnand %p339, %p340
      %p342 = pneg %p341
      // Predicated region
      $region9: #{tpu_custom_call.1} parent=5 // pred_check
        _
      $region10: #{tpu_custom_call.1} parent=5 // pred_check_branch
        %344 = sbr.rel (%p341) target = $region12
      $region11: #{tpu_custom_call.1} parent=5 // pred_region
        %s345 = ssub.s32 %s27, 1
        // Predicated region
        $region13: #{tpu_custom_call.1} parent=11 // pred_check
          %p346 = pneg %p74
        $region14: #{tpu_custom_call.1} parent=11 // pred_check_branch
          %348 = sbr.rel (%p346) target = $region16
        $region15: #{tpu_custom_call.1} parent=11 // pred_region
          _
        $region16: #{tpu_custom_call.1} parent=11 // pred_fallthru
          _
        // Predicated region
        $region17: #{tpu_custom_call.1} parent=11 // pred_check
          %p349 = pneg %p95
        $region18: #{tpu_custom_call.1} parent=11 // pred_check_branch
          %351 = sbr.rel (%p349) target = $region20
        $region19: #{tpu_custom_call.1} parent=11 // pred_region
          _
        $region20: #{tpu_custom_call.1} parent=11 // pred_fallthru
          _
        // Predicated region
        $region21: #{tpu_custom_call.1} parent=11 // pred_check
          %p352 = pneg %p116
        $region22: #{tpu_custom_call.1} parent=11 // pred_check_branch
          %354 = sbr.rel (%p352) target = $region24
        $region23: #{tpu_custom_call.1} parent=11 // pred_region
          _
        $region24: #{tpu_custom_call.1} parent=11 // pred_fallthru
          _
        // Predicated region
        $region25: #{tpu_custom_call.1} parent=11 // pred_check
          %p355 = pneg %p137
        $region26: #{tpu_custom_call.1} parent=11 // pred_check_branch
          %357 = sbr.rel (%p355) target = $region28
        $region27: #{tpu_custom_call.1} parent=11 // pred_region
          %s359 = ssub.s32 256, 256
          %360 = vsyncadd [#allocation6], %s359
          %s361 = sshll.u32 [#allocation5], 4
          %s362 = int_to_ptr.vmem [resolvable:$true] %s361
          %367 = dma.hbm_to_vmem [thread:$0]  %s4, 256, %s362, [#allocation6], 128, 128, 8
        $region28: #{tpu_custom_call.1} parent=11 // pred_fallthru
          _
        // Predicated region
        $region29: #{tpu_custom_call.1} parent=11 // pred_check
          %p368 = pneg %p158
        $region30: #{tpu_custom_call.1} parent=11 // pred_check_branch
          %370 = sbr.rel (%p368) target = $region32
        $region31: #{tpu_custom_call.1} parent=11 // pred_region
          _
        $region32: #{tpu_custom_call.1} parent=11 // pred_fallthru
          _
        // Predicated region
        $region33: #{tpu_custom_call.1} parent=11 // pred_check
          %p371 = pneg %p179
        $region34: #{tpu_custom_call.1} parent=11 // pred_check_branch
          %373 = sbr.rel (%p371) target = $region36
        $region35: #{tpu_custom_call.1} parent=11 // pred_region
          _
        $region36: #{tpu_custom_call.1} parent=11 // pred_fallthru
          _
        // Predicated region
        $region37: #{tpu_custom_call.1} parent=11 // pred_check
          %p374 = pneg %p200
        $region38: #{tpu_custom_call.1} parent=11 // pred_check_branch
          %376 = sbr.rel (%p374) target = $region40
        $region39: #{tpu_custom_call.1} parent=11 // pred_region
          %s378 = ssub.s32 1024, 1024
          %379 = vsyncadd [#allocation6], %s378
          %s380 = sshll.u32 [#allocation7], 4
          %s381 = int_to_ptr.vmem [resolvable:$true] %s380
          %386 = dma.hbm_to_vmem [thread:$0]  %s7, 1024, %s381, [#allocation6], 64, 64, 4
        $region40: #{tpu_custom_call.1} parent=11 // pred_fallthru
          _
        // Predicated region
        $region41: #{tpu_custom_call.1} parent=11 // pred_check
          %p387 = pneg %p221
        $region42: #{tpu_custom_call.1} parent=11 // pred_check_branch
          %389 = sbr.rel (%p387) target = $region44
        $region43: #{tpu_custom_call.1} parent=11 // pred_region
          _
        $region44: #{tpu_custom_call.1} parent=11 // pred_fallthru
          _
        // Predicated region
        $region45: #{tpu_custom_call.1} parent=11 // pred_check
          %p390 = pneg %p242
        $region46: #{tpu_custom_call.1} parent=11 // pred_check_branch
          %392 = sbr.rel (%p390) target = $region48
        $region47: #{tpu_custom_call.1} parent=11 // pred_region
          %s394 = ssub.s32 1024, 1024
          %395 = vsyncadd [#allocation9], %s394
          %s396 = sshll.u32 [#allocation8], 4
          %s397 = int_to_ptr.vmem [resolvable:$true] %s396
          %402 = dma.hbm_to_vmem [thread:$0]  %s9, 1024, %s397, [#allocation9], 64, 64, 4
        $region48: #{tpu_custom_call.1} parent=11 // pred_fallthru
          _
        // Predicated region
        $region49: #{tpu_custom_call.1} parent=11 // pred_check
          %p403 = pneg %p263
        $region50: #{tpu_custom_call.1} parent=11 // pred_check_branch
          %405 = sbr.rel (%p403) target = $region52
        $region51: #{tpu_custom_call.1} parent=11 // pred_region
          _
        $region52: #{tpu_custom_call.1} parent=11 // pred_fallthru
          _
        // Predicated region
        $region53: #{tpu_custom_call.1} parent=11 // pred_check
          %p406 = pneg %p284
        $region54: #{tpu_custom_call.1} parent=11 // pred_check_branch
          %408 = sbr.rel (%p406) target = $region56
        $region55: #{tpu_custom_call.1} parent=11 // pred_region
          _
        $region56: #{tpu_custom_call.1} parent=11 // pred_fallthru
          _
        // Predicated region
        $region57: #{tpu_custom_call.1} parent=11 // pred_check
          %p409 = pneg %p305
        $region58: #{tpu_custom_call.1} parent=11 // pred_check_branch
          %411 = sbr.rel (%p409) target = $region60
        $region59: #{tpu_custom_call.1} parent=11 // pred_region
          _
        $region60: #{tpu_custom_call.1} parent=11 // pred_fallthru
          _
      $region12: #{tpu_custom_call.1} parent=5 // pred_fallthru
        _
      %p412 = scmp.lt.s32.totalorder %s27, 2
      // Predicated region
      $region61: #{tpu_custom_call.1} parent=5 // pred_check
        %p413 = pneg %p412
      $region62: #{tpu_custom_call.1} parent=5 // pred_check_branch
        %415 = sbr.rel (%p413) target = $region64
      $region63: #{tpu_custom_call.1} parent=5 // pred_region
        // Predicated region
        $region65: #{tpu_custom_call.1} parent=63 // pred_check
          %p416 = pneg %p47
        $region66: #{tpu_custom_call.1} parent=63 // pred_check_branch
          %418 = sbr.rel (%p416) target = $region68
        $region67: #{tpu_custom_call.1} parent=63 // pred_region
          %s419 = sand.u32 %s37, 1
          %s420 = scalar_lea.sflag [#allocation3], %s419
          %s421 = sand.u32 %s37, 1
          %s422 = smul.addr %s421, 8
          %s423 = scalar_lea.vmem [#allocation2], %s422
          %s425 = ssub.s32 128, 128
          %426 = vsyncadd %s420, %s425
          %s427 = smul.addr %s27, 128
          %s428 = scalar_lea.hbm %s0, %s427
          %s430 = sshll.u32 %s423, 4
          %s431 = int_to_ptr.vmem [resolvable:$true] %s430
          %433 = dma.hbm_to_vmem [thread:$0]  %s428, 128, %s431, %s420
        $region68: #{tpu_custom_call.1} parent=63 // pred_fallthru
          _
      $region64: #{tpu_custom_call.1} parent=5 // pred_fallthru
        _
      %p434 = scmp.le.s32.totalorder 1, %s27
      %p435 = scmp.lt.s32.totalorder %s27, 3
      %p436 = pnand %p434, %p435
      %p437 = pneg %p436
      // Predicated region
      $region69: #{tpu_custom_call.1} parent=5 // pred_check
        _
      $region70: #{tpu_custom_call.1} parent=5 // pred_check_branch
        %439 = sbr.rel (%p436) target = $region72
      $region71: #{tpu_custom_call.1} parent=5 // pred_region
        %s440 = ssub.s32 %s27, 1
        %s441 = sand.u32 %s40, 1
        %s442 = scalar_lea.sflag [#allocation3], %s441
        %s443 = sand.u32 %s40, 1
        %s444 = smul.addr %s443, 8
        %s445 = scalar_lea.vmem [#allocation2], %s444
        // Predicated region
        $region73: #{tpu_custom_call.1} parent=71 // pred_check
          %p446 = pneg %p53
        $region74: #{tpu_custom_call.1} parent=71 // pred_check_branch
          %448 = sbr.rel (%p446) target = $region76
        $region75: #{tpu_custom_call.1} parent=71 // pred_region
          %449 = dma.done %s442, 128
        $region76: #{tpu_custom_call.1} parent=71 // pred_fallthru
          _
        // Predicated region
        $region77: #{tpu_custom_call.1} parent=71 // pred_check
          %p450 = pneg %p137
        $region78: #{tpu_custom_call.1} parent=71 // pred_check_branch
          %452 = sbr.rel (%p450) target = $region80
        $region79: #{tpu_custom_call.1} parent=71 // pred_region
          %453 = dma.done [#allocation6], 256
        $region80: #{tpu_custom_call.1} parent=71 // pred_fallthru
          _
        // Predicated region
        $region81: #{tpu_custom_call.1} parent=71 // pred_check
          %p454 = pneg %p200
        $region82: #{tpu_custom_call.1} parent=71 // pred_check_branch
          %456 = sbr.rel (%p454) target = $region84
        $region83: #{tpu_custom_call.1} parent=71 // pred_region
          %457 = dma.done [#allocation6], 1024
        $region84: #{tpu_custom_call.1} parent=71 // pred_fallthru
          _
        // Predicated region
        $region85: #{tpu_custom_call.1} parent=71 // pred_check
          %p458 = pneg %p242
        $region86: #{tpu_custom_call.1} parent=71 // pred_check_branch
          %460 = sbr.rel (%p458) target = $region88
        $region87: #{tpu_custom_call.1} parent=71 // pred_region
          %461 = dma.done [#allocation9], 1024
        $region88: #{tpu_custom_call.1} parent=71 // pred_fallthru
          _
        %s462 = sand.u32 %s40, 1
        %s463 = scalar_lea.sflag [#allocation3], %s462
        %s464 = sand.u32 %s40, 1
        %s465 = smul.addr %s464, 8
        %s466 = scalar_lea.vmem [#allocation2], %s465
        %p467 = pneg %p53
        %p468 = pneg %p50
        %p469 = pneg %p74
        %p470 = pneg %p71
        %p471 = pneg %p95
        %p472 = pneg %p92
        %p473 = pneg %p116
        %p474 = pneg %p113
        %p475 = pneg %p137
        %p476 = pneg %p134
        %p477 = pneg %p158
        %p478 = pneg %p155
        %p479 = pneg %p179
        %p480 = pneg %p176
        %p481 = pneg %p200
        %p482 = pneg %p197
        %p483 = pneg %p221
        %p484 = pneg %p218
        %p485 = pneg %p242
        %p486 = pneg %p239
        %p487 = pneg %p263
        %p488 = pneg %p260
        %p489 = pneg %p284
        %p490 = pneg %p281
        %p491 = pneg %p305
        %p492 = pneg %p302
        %p493 = pneg %p331
        %p494 = pneg %p328
        %s495 = sand.u32 %s318, 1
        %s496 = scalar_lea.sflag [#allocation4], %s495
        %s497 = sand.u32 %s318, 1
        %s498 = smul.addr %s497, 8
        %s499 = scalar_lea.vmem [#allocation10], %s498
        %v501 = vlaneseq
        %v502 = vand.u32 %v501, 127
        %vm503 = vcmp.lt.s32.totalorder %v502, 32
        %v504 = vsel %vm503, 1, 0
        %v505 = vcvt.s32.f32 %v504
        %v506 = vld [vmem:[%s1] sm:$0xf]
        %v507 = vld [vmem:[%s1 + $0x4] sm:$0xf]
        %v508 = vld [vmem:[%s445] sm:$0xff]
        %v509 = vpack.c.bf16 %v508, %v508
        %v512 = vunpack.c.l.b16 %v506
        %v513 = vunpack.c.l.b16 %v507
        %v514 = vpack.c.b16 %v513, %v512
        %vm515 = vcmask 64512
        %v517 = vsel %vm515, %v514, 0
        %vm519 = vcmask 1043456
        %v521 = vsel %vm519, %v509, 0
        %523 = vmatprep.subr.bf16.mxu0 0
        %524 = vmatpush1.bf16.msra.mxu0 %v521
        %525 = vmatprep.subr.bf16.mxu0 0
        %526 = vmatpush1.bf16.msra.mxu0 0
        %527 = vmatprep.subr.bf16.mxu0 0
        %528 = vmatpush1.bf16.msra.mxu0 0
        %529 = vmatprep.subr.bf16.mxu0 0
        %530 = vmatpush1.bf16.msra.mxu0 0
        %531 = vmatprep.subr.bf16.mxu0 0
        %532 = vmatpush1.bf16.msra.mxu0 0
        %533 = vmatprep.subr.bf16.mxu0 0
        %534 = vmatpush1.bf16.msra.mxu0 0
        %535 = vmatprep.subr.bf16.mxu0 0
        %536 = vmatpush1.bf16.msra.mxu0 0
        %537 = vmatprep.subr.bf16.mxu0 0
        %538 = vmatpush1.bf16.msra.mxu0 0
        %539 = vmatprep.subr.bf16.mxu0 0
        %540 = vmatpush1.bf16.msra.mxu0 0
        %541 = vmatprep.subr.bf16.mxu0 0
        %542 = vmatpush1.bf16.msra.mxu0 0
        %543 = vmatprep.subr.bf16.mxu0 0
        %544 = vmatpush1.bf16.msra.mxu0 0
        %545 = vmatprep.subr.bf16.mxu0 0
        %546 = vmatpush1.bf16.msra.mxu0 0
        %547 = vmatprep.subr.bf16.mxu0 0
        %548 = vmatpush1.bf16.msra.mxu0 0
        %549 = vmatprep.subr.bf16.mxu0 0
        %550 = vmatpush1.bf16.msra.mxu0 0
        %551 = vmatprep.subr.bf16.mxu0 0
        %552 = vmatpush1.bf16.msra.mxu0 0
        %553 = vmatprep.subr.bf16.mxu0 0
        %554 = vmatpush1.bf16.msra.mxu0 0
        %555 = vmatprep.mubr.bf16.mxu0 0
        %556 = vmatmul.mubr.bf16.gmra.mrb[0].mxu0 %v517
        %v557 = vpop.f32.mrb[0].mxu0
        %v558 = vadd.f32 0.0, %v557
        %v559 = vpop.f32.mrb[0].mxu0
        %v560 = vpop.f32.mrb[0].mxu0
        %v561 = vadd.f32 0.0, %v560
        %v562 = vpop.f32.mrb[0].mxu0
        %563 = vdwg.mxu0
        %v564 = vld [vmem:[%s3] sm:$0xff]
        %v565 = vld [vmem:[%s3 + $0x8] sm:$0xff]
        %v566 = vmul.f32 %v558, %v564
        %v567 = vmul.f32 %v561, %v565
        %v568 = vld [vmem:[#allocation5] sm:$0xff]
        %v569 = vld [vmem:[#allocation5 + $0x8] sm:$0xff]
        %v570 = vmul.f32 %v561, %v568
        %v571 = vmul.f32 %v558, %v569
        %v572 = vadd.f32 %v566, %v570
        %v573 = vadd.f32 %v567, %v571
        %v574 = vpack.c.bf16 %v573, %v572
        %v575 = vld [vmem:[#allocation7] sm:$0xf]
        %v576 = vld [vmem:[#allocation7 + $0x4] sm:$0xf]
        %v577 = vld [vmem:[#allocation7 + $0x8] sm:$0xf]
        %v578 = vld [vmem:[#allocation7 + $0xc] sm:$0xf]
        %v579 = vld [vmem:[#allocation7 + $0x10] sm:$0xf]
        %v580 = vld [vmem:[#allocation7 + $0x14] sm:$0xf]
        %v581 = vld [vmem:[#allocation7 + $0x18] sm:$0xf]
        %v582 = vld [vmem:[#allocation7 + $0x1c] sm:$0xf]
        %v583 = vld [vmem:[#allocation7 + $0x20] sm:$0xf]
        %v584 = vld [vmem:[#allocation7 + $0x24] sm:$0xf]
        %v585 = vld [vmem:[#allocation7 + $0x28] sm:$0xf]
        %v586 = vld [vmem:[#allocation7 + $0x2c] sm:$0xf]
        %v587 = vld [vmem:[#allocation7 + $0x30] sm:$0xf]
        %v588 = vld [vmem:[#allocation7 + $0x34] sm:$0xf]
        %v589 = vld [vmem:[#allocation7 + $0x38] sm:$0xf]
        %v590 = vld [vmem:[#allocation7 + $0x3c] sm:$0xf]
        %v591 = vld [vmem:[#allocation8] sm:$0xf]
        %v592 = vld [vmem:[#allocation8 + $0x4] sm:$0xf]
        %v593 = vld [vmem:[#allocation8 + $0x8] sm:$0xf]
        %v594 = vld [vmem:[#allocation8 + $0xc] sm:$0xf]
        %v595 = vld [vmem:[#allocation8 + $0x10] sm:$0xf]
        %v596 = vld [vmem:[#allocation8 + $0x14] sm:$0xf]
        %v597 = vld [vmem:[#allocation8 + $0x18] sm:$0xf]
        %v598 = vld [vmem:[#allocation8 + $0x1c] sm:$0xf]
        %v599 = vld [vmem:[#allocation8 + $0x20] sm:$0xf]
        %v600 = vld [vmem:[#allocation8 + $0x24] sm:$0xf]
        %v601 = vld [vmem:[#allocation8 + $0x28] sm:$0xf]
        %v602 = vld [vmem:[#allocation8 + $0x2c] sm:$0xf]
        %v603 = vld [vmem:[#allocation8 + $0x30] sm:$0xf]
        %v604 = vld [vmem:[#allocation8 + $0x34] sm:$0xf]
        %v605 = vld [vmem:[#allocation8 + $0x38] sm:$0xf]
        %v606 = vld [vmem:[#allocation8 + $0x3c] sm:$0xf]
        %v607 = vld [vmem:[%s8] sm:$0x1]
        %v608 = vld [vmem:[%s10] sm:$0x1]
        %v609 = vld [vmem:[%s5] sm:$0x1]
        %v610 = vld [vmem:[%s6] sm:$0x1]
        %v611 = vld [vmem:[%s11] sm:$0x1]
        %v612 = vld [vmem:[%s12] sm:$0x1]
        %v613 = vld [vmem:[%s2] sm:$0xf]
        %vm614 = vcmask 130048
        %v616 = vsel %vm614, %v613, 0
        %618 = vmatprep.subr.bf16.mxu0 0
        %619 = vmatpush1.bf16.msra.mxu0 %v574
        %620 = vmatprep.subr.bf16.mxu0 0
        %621 = vmatpush1.bf16.msra.mxu0 0
        %622 = vmatprep.subr.bf16.mxu0 0
        %623 = vmatpush1.bf16.msra.mxu0 0
        %624 = vmatprep.subr.bf16.mxu0 0
        %625 = vmatpush1.bf16.msra.mxu0 0
        %626 = vmatprep.subr.bf16.mxu0 0
        %627 = vmatpush1.bf16.msra.mxu0 0
        %628 = vmatprep.subr.bf16.mxu0 0
        %629 = vmatpush1.bf16.msra.mxu0 0
        %630 = vmatprep.subr.bf16.mxu0 0
        %631 = vmatpush1.bf16.msra.mxu0 0
        %632 = vmatprep.subr.bf16.mxu0 0
        %633 = vmatpush1.bf16.msra.mxu0 0
        %634 = vmatprep.subr.bf16.mxu0 0
        %635 = vmatpush1.bf16.msra.mxu0 0
        %636 = vmatprep.subr.bf16.mxu0 0
        %637 = vmatpush1.bf16.msra.mxu0 0
        %638 = vmatprep.subr.bf16.mxu0 0
        %639 = vmatpush1.bf16.msra.mxu0 0
        %640 = vmatprep.subr.bf16.mxu0 0
        %641 = vmatpush1.bf16.msra.mxu0 0
        %642 = vmatprep.subr.bf16.mxu0 0
        %643 = vmatpush1.bf16.msra.mxu0 0
        %644 = vmatprep.subr.bf16.mxu0 0
        %645 = vmatpush1.bf16.msra.mxu0 0
        %646 = vmatprep.subr.bf16.mxu0 0
        %647 = vmatpush1.bf16.msra.mxu0 0
        %648 = vmatprep.subr.bf16.mxu0 0
        %649 = vmatpush1.bf16.msra.mxu0 0
        %650 = vmatprep.mubr.bf16.mxu0 0
        %651 = vmatmul.mubr.bf16.gmra.mrb[0].mxu0 %v616
        %v652 = vpop.f32.mrb[0].mxu0
        %v653 = vadd.f32 %v508, %v652
        %v654 = vpop.f32.mrb[0].mxu0
        %v655 = vpop.f32.mrb[0].mxu0
        %v656 = vpop.f32.mrb[0].mxu0
        %657 = vdwg.mxu0
        %658 = vadd.xlane.f32.xlu0 %v653
        %v659 = vpop.xlane.xlu0 %658
        %v660 = vmul.f32 %v659, 0.03125
        %v661 = vsub.f32 %v653, %v660
        %v662 = vmul.f32 %v661, %v505
        %v663 = vmul.f32 %v662, %v662
        %664 = vadd.xlane.f32.xlu0 %v663
        %v665 = vpop.xlane.xlu0 %664
        %v666 = vmul.f32 %v665, 0.03125
        %v667 = vadd.f32 %v666, 1e-12
        %v668 = vrsqrt.pop %v667
        %v669 = vmul.f32 %v662, %v668
        %v671 = vlaneseq
        %v672 = vshrl.u32 %v671, 7
        %v673 = vsub.s32 0, %v672
        %v674 = vrot.slane %v609, %v673
        %v676 = vmul.f32 %v674, %v669
        %v678 = vlaneseq
        %v679 = vshrl.u32 %v678, 7
        %v680 = vsub.s32 0, %v679
        %v681 = vrot.slane %v610, %v680
        %v683 = vadd.f32 %v676, %v681
        %v684 = vpack.c.bf16 %v683, %v683
        %v686 = vlaneseq
        %v687 = vshrl.u32 %v686, 7
        %v688 = vsub.s32 0, %v687
        %v689 = vrot.slane %v607, %v688
        %v707 = vunpack.c.l.b16 %v575
        %v708 = vunpack.c.l.b16 %v576
        %v709 = vunpack.c.l.b16 %v577
        %v710 = vunpack.c.l.b16 %v578
        %v711 = vunpack.c.l.b16 %v579
        %v712 = vunpack.c.l.b16 %v580
        %v713 = vunpack.c.l.b16 %v581
        %v714 = vunpack.c.l.b16 %v582
        %v715 = vunpack.c.l.b16 %v583
        %v716 = vunpack.c.l.b16 %v584
        %v717 = vunpack.c.l.b16 %v585
        %v718 = vunpack.c.l.b16 %v586
        %v719 = vunpack.c.l.b16 %v587
        %v720 = vunpack.c.l.b16 %v588
        %v721 = vunpack.c.l.b16 %v589
        %v722 = vunpack.c.l.b16 %v590
        %v723 = vpack.c.b16 %v708, %v707
        %v724 = vpack.c.b16 %v710, %v709
        %v725 = vpack.c.b16 %v712, %v711
        %v726 = vpack.c.b16 %v714, %v713
        %v727 = vpack.c.b16 %v716, %v715
        %v728 = vpack.c.b16 %v718, %v717
        %v729 = vpack.c.b16 %v720, %v719
        %v730 = vpack.c.b16 %v722, %v721
        %739 = vmatprep.subr.bf16.mxu0 0
        %740 = vmatpush1.bf16.msra.mxu0 %v723
        %741 = vmatprep.subr.bf16.mxu0 0
        %742 = vmatpush1.bf16.msra.mxu0 %v724
        %743 = vmatprep.subr.bf16.mxu0 0
        %744 = vmatpush1.bf16.msra.mxu0 %v725
        %745 = vmatprep.subr.bf16.mxu0 0
        %746 = vmatpush1.bf16.msra.mxu0 %v726
        %747 = vmatprep.subr.bf16.mxu0 0
        %748 = vmatpush1.bf16.msra.mxu0 %v727
        %749 = vmatprep.subr.bf16.mxu0 0
        %750 = vmatpush1.bf16.msra.mxu0 %v728
        %751 = vmatprep.subr.bf16.mxu0 0
        %752 = vmatpush1.bf16.msra.mxu0 %v729
        %753 = vmatprep.subr.bf16.mxu0 0
        %754 = vmatpush1.bf16.msra.mxu0 %v730
        %755 = vmatprep.subr.bf16.mxu0 0
        %756 = vmatpush1.bf16.msra.mxu0 0
        %757 = vmatprep.subr.bf16.mxu0 0
        %758 = vmatpush1.bf16.msra.mxu0 0
        %759 = vmatprep.subr.bf16.mxu0 0
        %760 = vmatpush1.bf16.msra.mxu0 0
        %761 = vmatprep.subr.bf16.mxu0 0
        %762 = vmatpush1.bf16.msra.mxu0 0
        %763 = vmatprep.subr.bf16.mxu0 0
        %764 = vmatpush1.bf16.msra.mxu0 0
        %765 = vmatprep.subr.bf16.mxu0 0
        %766 = vmatpush1.bf16.msra.mxu0 0
        %767 = vmatprep.subr.bf16.mxu0 0
        %768 = vmatpush1.bf16.msra.mxu0 0
        %769 = vmatprep.subr.bf16.mxu0 0
        %770 = vmatpush1.bf16.msra.mxu0 0
        %771 = vmatprep.mubr.bf16.mxu0 0
        %772 = vmatmul.mubr.bf16.gmra.mrb[0].mxu0 %v684
        %v773 = vpop.f32.mrb[0].mxu0
        %v774 = vadd.f32 %v689, %v773
        %v775 = vpop.f32.mrb[0].mxu0
        %v776 = vpop.f32.mrb[0].mxu0
        %v777 = vpop.f32.mrb[0].mxu0
        %778 = vdwg.mxu0
        %v779 = vmul.f32 %v774, 0.5
        %v780 = vmul.f32 %v774, 0.70710677
        %v781 = verf.f32.pop %v780
        %v782 = vadd.f32 %v781, 1.0
        %v783 = vmul.f32 %v779, %v782
        %v784 = vpack.c.bf16 %v783, %v783
        %v786 = vlaneseq
        %v787 = vshrl.u32 %v786, 7
        %v788 = vsub.s32 0, %v787
        %v789 = vrot.slane %v608, %v788
        %v807 = vunpack.c.l.b16 %v591
        %v808 = vunpack.c.l.b16 %v592
        %v809 = vunpack.c.l.b16 %v593
        %v810 = vunpack.c.l.b16 %v594
        %v811 = vunpack.c.l.b16 %v595
        %v812 = vunpack.c.l.b16 %v596
        %v813 = vunpack.c.l.b16 %v597
        %v814 = vunpack.c.l.b16 %v598
        %v815 = vunpack.c.l.b16 %v599
        %v816 = vunpack.c.l.b16 %v600
        %v817 = vunpack.c.l.b16 %v601
        %v818 = vunpack.c.l.b16 %v602
        %v819 = vunpack.c.l.b16 %v603
        %v820 = vunpack.c.l.b16 %v604
        %v821 = vunpack.c.l.b16 %v605
        %v822 = vunpack.c.l.b16 %v606
        %v823 = vpack.c.b16 %v808, %v807
        %v824 = vpack.c.b16 %v810, %v809
        %v825 = vpack.c.b16 %v812, %v811
        %v826 = vpack.c.b16 %v814, %v813
        %v827 = vpack.c.b16 %v816, %v815
        %v828 = vpack.c.b16 %v818, %v817
        %v829 = vpack.c.b16 %v820, %v819
        %v830 = vpack.c.b16 %v822, %v821
        %839 = vmatprep.subr.bf16.mxu0 0
        %840 = vmatpush1.bf16.msra.mxu0 %v823
        %841 = vmatprep.subr.bf16.mxu0 0
        %842 = vmatpush1.bf16.msra.mxu0 %v824
        %843 = vmatprep.subr.bf16.mxu0 0
        %844 = vmatpush1.bf16.msra.mxu0 %v825
        %845 = vmatprep.subr.bf16.mxu0 0
        %846 = vmatpush1.bf16.msra.mxu0 %v826
        %847 = vmatprep.subr.bf16.mxu0 0
        %848 = vmatpush1.bf16.msra.mxu0 %v827
        %849 = vmatprep.subr.bf16.mxu0 0
        %850 = vmatpush1.bf16.msra.mxu0 %v828
        %851 = vmatprep.subr.bf16.mxu0 0
        %852 = vmatpush1.bf16.msra.mxu0 %v829
        %853 = vmatprep.subr.bf16.mxu0 0
        %854 = vmatpush1.bf16.msra.mxu0 %v830
        %855 = vmatprep.subr.bf16.mxu0 0
        %856 = vmatpush1.bf16.msra.mxu0 0
        %857 = vmatprep.subr.bf16.mxu0 0
        %858 = vmatpush1.bf16.msra.mxu0 0
        %859 = vmatprep.subr.bf16.mxu0 0
        %860 = vmatpush1.bf16.msra.mxu0 0
        %861 = vmatprep.subr.bf16.mxu0 0
        %862 = vmatpush1.bf16.msra.mxu0 0
        %863 = vmatprep.subr.bf16.mxu0 0
        %864 = vmatpush1.bf16.msra.mxu0 0
        %865 = vmatprep.subr.bf16.mxu0 0
        %866 = vmatpush1.bf16.msra.mxu0 0
        %867 = vmatprep.subr.bf16.mxu0 0
        %868 = vmatpush1.bf16.msra.mxu0 0
        %869 = vmatprep.subr.bf16.mxu0 0
        %870 = vmatpush1.bf16.msra.mxu0 0
        %871 = vmatprep.mubr.bf16.mxu0 0
        %872 = vmatmul.mubr.bf16.gmra.mrb[0].mxu0 %v784
        %v873 = vpop.f32.mrb[0].mxu0
        %v874 = vadd.f32 %v789, %v873
        %v875 = vpop.f32.mrb[0].mxu0
        %v876 = vpop.f32.mrb[0].mxu0
        %v877 = vpop.f32.mrb[0].mxu0
        %878 = vdwg.mxu0
        %v879 = vadd.f32 %v874, %v683
        %880 = vadd.xlane.f32.xlu0 %v879
        %v881 = vpop.xlane.xlu0 %880
        %v882 = vmul.f32 %v881, 0.03125
        %v883 = vsub.f32 %v879, %v882
        %v884 = vmul.f32 %v883, %v505
        %v885 = vmul.f32 %v884, %v884
        %886 = vadd.xlane.f32.xlu0 %v885
        %v887 = vpop.xlane.xlu0 %886
        %v888 = vmul.f32 %v887, 0.03125
        %v889 = vadd.f32 %v888, 1e-12
        %v890 = vrsqrt.pop %v889
        %v891 = vmul.f32 %v884, %v890
        %v893 = vlaneseq
        %v894 = vshrl.u32 %v893, 7
        %v895 = vsub.s32 0, %v894
        %v896 = vrot.slane %v611, %v895
        %v898 = vmul.f32 %v896, %v891
        %v900 = vlaneseq
        %v901 = vshrl.u32 %v900, 7
        %v902 = vsub.s32 0, %v901
        %v903 = vrot.slane %v612, %v902
        %v905 = vadd.f32 %v898, %v903
        %906 = vst [vmem:[%s499] sm:$0xff] %v905
        %s907 = sand.u32 %s318, 1
        %s908 = scalar_lea.sflag [#allocation4], %s907
        %s909 = sand.u32 %s318, 1
        %s910 = smul.addr %s909, 8
        %s911 = scalar_lea.vmem [#allocation10], %s910
        // Predicated region
        $region89: #{tpu_custom_call.1} parent=71 // pred_check
          %p912 = pneg %p328
        $region90: #{tpu_custom_call.1} parent=71 // pred_check_branch
          %914 = sbr.rel (%p912) target = $region92
        $region91: #{tpu_custom_call.1} parent=71 // pred_region
          %s916 = ssub.s32 128, 128
          %917 = vsyncadd %s908, %s916
          %s918 = smul.addr %s32, 128
          %s919 = scalar_lea.hbm %s13, %s918
          %s921 = sshll.u32 %s911, 4
          %s922 = int_to_ptr.vmem [resolvable:$true] %s921
          %924 = dma.vmem_to_hbm [thread:$0]  %s922, 128, %s919, %s908
        $region92: #{tpu_custom_call.1} parent=71 // pred_fallthru
          _
      $region72: #{tpu_custom_call.1} parent=5 // pred_fallthru
        _
      %p925 = scmp.le.s32.totalorder 2, %s27
      // Predicated region
      $region93: #{tpu_custom_call.1} parent=5 // pred_check
        %p926 = pneg %p925
      $region94: #{tpu_custom_call.1} parent=5 // pred_check_branch
        %928 = sbr.rel (%p926) target = $region96
      $region95: #{tpu_custom_call.1} parent=5 // pred_region
        %s929 = ssub.s32 %s27, 2
        // Predicated region
        $region97: #{tpu_custom_call.1} parent=95 // pred_check
          %p930 = pneg %p334
        $region98: #{tpu_custom_call.1} parent=95 // pred_check_branch
          %932 = sbr.rel (%p930) target = $region100
        $region99: #{tpu_custom_call.1} parent=95 // pred_region
          %s933 = sand.u32 %s319, 1
          %s934 = scalar_lea.sflag [#allocation4], %s933
          %s935 = sand.u32 %s319, 1
          %s936 = smul.addr %s935, 8
          %s937 = scalar_lea.vmem [#allocation10], %s936
          %938 = dma.done %s934, 128
        $region100: #{tpu_custom_call.1} parent=95 // pred_fallthru
          _
      $region96: #{tpu_custom_call.1} parent=5 // pred_fallthru
        _
    $region6: #{tpu_custom_call.1} parent=1 // loop_footer
      %s31 = sadd.s32 1, %s27
    $region7: #{tpu_custom_call.1} parent=1 // loop_footer_branch
      %26 = sbr.rel target = $region3
    $region8: #{tpu_custom_call.1} parent=1 // loop_exit
      _
    %939 = vsyncpa [#allocation3], 1
    %s940 = scalar_lea.sflag [#allocation3], 1
    %941 = vsyncpa %s940, 1
    %942 = vsyncpa [#allocation6], 1
    %943 = vsyncpa [#allocation9], 1
    %944 = vsyncpa [#allocation4], 1
    %s945 = scalar_lea.sflag [#allocation4], 1
    %946 = vsyncpa %s945, 1

</llo_original>
